<compile_context>
chip_gen: v6e
topology: v6e:2x2x1
jax: 0.10.0
libtpu: 0.0.40
codegen_flags: <defaults>
</compile_context>

<pallas_src>
import math

import jax
import jax.numpy as jnp
from jax import lax
from jax.experimental import pallas as pl
from jax.experimental.pallas import tpu as pltpu

_VMEM_LIMIT_BYTES = 48 * 1024 * 1024   # < 64 MiB physical on v7x; plenty on v5e/v6e
_VMEM_TILE_BUDGET = 24 * 1024 * 1024   # target double-buffered tile footprint


def _round_up(x, m):
    return ((x + m - 1) // m) * m


def _cast(x, dtype):
    return x if x.dtype == jnp.dtype(dtype) else x.astype(dtype)


def _mask_k(a, b, k_start, k_valid):
    """Zero out-of-range K columns of `a` / rows of `b` (edge K block safety)."""
    col = k_start + lax.broadcasted_iota(jnp.int32, a.shape, 1)
    a = jnp.where(col < k_valid, a, jnp.zeros_like(a))
    row = k_start + lax.broadcasted_iota(jnp.int32, b.shape, 0)
    b = jnp.where(row < k_valid, b, jnp.zeros_like(b))
    return a, b


# --------------------------------------------------------------------------
# Fused kernel:  out_tile = (sum_k adj_tile @ x_tile) @ W + bias
# Grid = (rows/tm, K/tk); W and bias are whole-array VMEM residents.
# --------------------------------------------------------------------------
def _make_fused_kernel(k_valid, block_k, mask_k):
    def kernel(a_ref, b_ref, w_ref, bias_ref, o_ref, acc_ref):
        k = pl.program_id(1)

        @pl.when(k == 0)
        def _init():
            acc_ref[...] = jnp.zeros_like(acc_ref)

        a = a_ref[...]
        b = b_ref[...]
        if mask_k:  # static: only emitted when K % tk != 0
            a, b = _mask_k(a, b, k * block_k, k_valid)
        acc_ref[...] += jnp.dot(a, b, preferred_element_type=jnp.float32)

        @pl.when(k == pl.num_programs(1) - 1)
        def _finalize():
            o_ref[...] = (jnp.dot(acc_ref[...], w_ref[...],
                                  preferred_element_type=jnp.float32)
                          + bias_ref[...]).astype(o_ref.dtype)
    return kernel


def _fused_adj_matmul(adj, x_p, w_p, bias_p):
    """(adj @ x_p) @ w_p + bias_p in one pallas_call.

    adj: (M, K) unpadded (K edge masked in-kernel).
    x_p: (K, Fin_p)  zero-padded feature columns, Fin_p % 128 == 0.
    w_p: (Fin_p, Fout_p) zero-padded, f32.   bias_p: (1, Fout_p) f32.
    Returns (M, Fout_p) f32.
    """
    M, K = adj.shape
    K2, fin_p = x_p.shape
    fin_p2, fout_p = w_p.shape
    assert K == K2 and fin_p == fin_p2 and bias_p.shape == (1, fout_p)
    isz = jnp.dtype(adj.dtype).itemsize

    tm = min(1024, _round_up(M, 8))
    tk = min(1024, _round_up(K, 128))

    def footprint(tm_, tk_):
        return (2 * tm_ * tk_ * isz            # adj tiles (double buffered)
                + 2 * tk_ * fin_p * isz        # x tiles
                + tm_ * fin_p * 4              # accumulator scratch
                + 2 * tm_ * fout_p * 4         # output tiles
                + fin_p * fout_p * 4 + fout_p * 4)

    for _ in range(20):
        if footprint(tm, tk) <= _VMEM_TILE_BUDGET:
            break
        if tk > 128:
            tk = max(128, _round_up(tk // 2, 128))
        elif tm > 8:
            tm = max(8, _round_up(tm // 2, 8))
        else:
            break

    grid = (pl.cdiv(M, tm), pl.cdiv(K, tk))
    mask_k = (K % tk) != 0
    kernel = _make_fused_kernel(K, tk, mask_k)

    cost = pl.CostEstimate(
        flops=2 * M * K * fin_p + 2 * M * fin_p * fout_p,
        transcendentals=0,
        bytes_accessed=int(M * K * isz                    # adj streamed once
                           + grid[0] * K * fin_p * isz    # x re-read per row tile
                           + fin_p * fout_p * 4 + fout_p * 4
                           + M * fout_p * 4))

    return pl.pallas_call(
        kernel,
        out_shape=jax.ShapeDtypeStruct((M, fout_p), jnp.float32),
        grid_spec=pltpu.PrefetchScalarGridSpec(
            num_scalar_prefetch=0,
            grid=grid,
            in_specs=[
                pl.BlockSpec((tm, tk), lambda i, k: (i, k)),          # adj
                pl.BlockSpec((tk, fin_p), lambda i, k: (k, 0)),       # x
                pl.BlockSpec((fin_p, fout_p), lambda i, k: (0, 0)),   # W (resident)
                pl.BlockSpec((1, fout_p), lambda i, k: (0, 0)),       # bias (resident)
            ],
            out_specs=pl.BlockSpec((tm, fout_p), lambda i, k: (i, 0)),
            scratch_shapes=[pltpu.VMEM((tm, fin_p), jnp.float32)],
        ),
        compiler_params=pltpu.CompilerParams(
            dimension_semantics=("parallel", "arbitrary"),
            vmem_limit_bytes=_VMEM_LIMIT_BYTES),
        cost_estimate=cost,
    )(adj, x_p, w_p, bias_p)


# --------------------------------------------------------------------------
# General tiled matmul (fallback path): out = a @ b (+ bias_row)
# f32 output accumulates directly into o_ref (no scratch); bf16 output uses
# an f32 scratch accumulator.  No bias operand when bias_row is None.
# --------------------------------------------------------------------------
def _make_matmul_kernel(k_valid, block_k, mask_k, has_bias, use_scratch):
    def kernel(*refs):
        a_ref, b_ref = refs[0], refs[1]
        idx = 2
        bias_ref = None
        if has_bias:
            bias_ref = refs[idx]
            idx += 1
        o_ref = refs[idx]
        idx += 1
        acc_ref = refs[idx] if use_scratch else o_ref

        k = pl.program_id(2)

        @pl.when(k == 0)
        def _init():
            acc_ref[...] = jnp.zeros_like(acc_ref)

        a = a_ref[...]
        b = b_ref[...]
        if mask_k:
            a, b = _mask_k(a, b, k * block_k, k_valid)
        acc_ref[...] += jnp.dot(a, b, preferred_element_type=jnp.float32)

        if has_bias or use_scratch:
            @pl.when(k == pl.num_programs(2) - 1)
            def _finalize():
                out = acc_ref[...]
                if has_bias:
                    out = out + bias_ref[...]
                o_ref[...] = out.astype(o_ref.dtype)
    return kernel


def _tiled_matmul(a, b, bias_row=None, *, out_dtype=jnp.float32):
    M, K = a.shape
    K2, N = b.shape
    assert K == K2
    assert N % 128 == 0, "callers pass a lane-aligned rhs"
    has_bias = bias_row is not None
    use_scratch = jnp.dtype(out_dtype) != jnp.dtype(jnp.float32)
    isz = jnp.dtype(a.dtype).itemsize
    osz = jnp.dtype(out_dtype).itemsize

    tm = min(1024, _round_up(M, 8))
    tn = min(512, N)
    tk = min(1024, _round_up(K, 128))

    def footprint(tm_, tn_, tk_):
        f = 2 * tm_ * tk_ * isz + 2 * tk_ * tn_ * isz + 2 * tm_ * tn_ * osz
        if use_scratch:
            f += tm_ * tn_ * 4
        if has_bias:
            f += 2 * tn_ * 4
        return f

    for _ in range(20):
        if footprint(tm, tn, tk) <= _VMEM_TILE_BUDGET:
            break
        if tk > 128:
            tk = max(128, _round_up(tk // 2, 128))
        elif tn > 128:
            tn = max(128, _round_up(tn // 2, 128))
        elif tm > 8:
            tm = max(8, _round_up(tm // 2, 8))
        else:
            break

    grid = (pl.cdiv(M, tm), pl.cdiv(N, tn), pl.cdiv(K, tk))
    mask_k = (K % tk) != 0
    kernel = _make_matmul_kernel(K, tk, mask_k, has_bias, use_scratch)

    in_specs = [
        pl.BlockSpec((tm, tk), lambda i, j, k: (i, k)),
        pl.BlockSpec((tk, tn), lambda i, j, k: (k, j)),
    ]
    operands = [a, b]
    if has_bias:
        in_specs.append(pl.BlockSpec((1, tn), lambda i, j, k: (0, j)))
        operands.append(bias_row)
    scratch = [pltpu.VMEM((tm, tn), jnp.float32)] if use_scratch else []

    cost = pl.CostEstimate(
        flops=2 * M * N * K,
        transcendentals=0,
        bytes_accessed=int(grid[1] * M * K * isz      # a re-read per column tile
                           + grid[0] * K * N * isz    # b re-read per row tile
                           + M * N * osz
                           + (N * 4 if has_bias else 0)))

    return pl.pallas_call(
        kernel,
        out_shape=jax.ShapeDtypeStruct((M, N), out_dtype),
        grid_spec=pltpu.PrefetchScalarGridSpec(
            num_scalar_prefetch=0,
            grid=grid,
            in_specs=in_specs,
            out_specs=pl.BlockSpec((tm, tn), lambda i, j, k: (i, j)),
            scratch_shapes=scratch,
        ),
        compiler_params=pltpu.CompilerParams(
            dimension_semantics=("parallel", "parallel", "arbitrary"),
            vmem_limit_bytes=_VMEM_LIMIT_BYTES),
        cost_estimate=cost,
    )(*operands)


# --------------------------------------------------------------------------
# Public entry point
# --------------------------------------------------------------------------
def graph_convolution(x, adj, weight, bias=None, *, use_bf16=False):
    """GCN forward: adj @ (x @ weight) + bias.

    use_bf16=True streams adj / x / support in bf16 with f32 accumulation
    (recommended by the perf review for v5e/v6e/v7x when the numerics allow);
    default False preserves the PyTorch module's f32 behaviour.
    """
    n, in_f = x.shape
    in_f2, out_f = weight.shape
    assert in_f == in_f2 and adj.shape == (n, n)
    compute_dtype = jnp.bfloat16 if use_bf16 else jnp.float32

    fin_p = _round_up(in_f, 128)
    fout_p = _round_up(out_f, 128)

    if bias is None:
        bias_p = jnp.zeros((1, fout_p), jnp.float32)
    else:
        bias_p = jnp.pad(bias.reshape(1, out_f).astype(jnp.float32),
                         ((0, 0), (0, fout_p - out_f)))

    if fin_p <= fout_p:
        # Fused single-call path: (adj @ x) @ W + b.  adj is streamed unpadded.
        x_p = jnp.pad(_cast(x, compute_dtype), ((0, 0), (0, fin_p - in_f)))
        w_p = jnp.pad(weight.astype(jnp.float32),
                      ((0, fin_p - in_f), (0, fout_p - out_f)))
        out_p = _fused_adj_matmul(_cast(adj, compute_dtype), x_p, w_p, bias_p)
    else:
        # Wide-in / narrow-out: project first (cheap), then the big adj matmul
        # only carries out_f columns.  Intermediate stays in compute_dtype.
        w_c = jnp.pad(_cast(weight, compute_dtype),
                      ((0, 0), (0, fout_p - out_f)))
        support = _tiled_matmul(_cast(x, compute_dtype), w_c,
                                out_dtype=compute_dtype)          # (n, fout_p)
        out_p = _tiled_matmul(_cast(adj, compute_dtype), support,
                              bias_row=(None if bias is None else bias_p),
                              out_dtype=jnp.float32)

    return out_p if fout_p == out_f else out_p[:, :out_f]


if __name__ == "__main__":
    # Shapes consistent with the module: num_nodes=8, in_features=16, out_features=32.
    num_nodes, in_features, out_features = 8, 16, 32

    key = jax.random.PRNGKey(0)
    kx, kadj, kw, kb = jax.random.split(key, 4)

    # Deterministic init mirroring reset_parameters(): uniform(-stdv, stdv),
    # stdv = 1 / sqrt(out_features).
    stdv = 1.0 / math.sqrt(out_features)
    weight = jax.random.uniform(kw, (in_features, out_features),
                                dtype=jnp.float32, minval=-stdv, maxval=stdv)
    bias = jax.random.uniform(kb, (out_features,),
                              dtype=jnp.float32, minval=-stdv, maxval=stdv)
    x = jax.random.normal(kx, (num_nodes, in_features), dtype=jnp.float32)
    adj_raw = jax.random.uniform(kadj, (num_nodes, num_nodes), dtype=jnp.float32)
    adj = adj_raw / jnp.sum(adj_raw, axis=-1, keepdims=True)

    gcn = jax.jit(graph_convolution, static_argnames=("use_bf16",))

    ref = adj @ (x @ weight) + bias
    out = jax.block_until_ready(gcn(x, adj, weight, bias))
    assert out.shape == (num_nodes, out_features)
    assert jnp.allclose(out, ref, atol=1e-4, rtol=1e-4)

    # No-bias variant (module supports bias=False).
    out_nb = jax.block_until_ready(gcn(x, adj, weight, None))
    assert jnp.allclose(out_nb, adj @ (x @ weight), atol=1e-4, rtol=1e-4)

    # Wide-in / narrow-out exercises the projection-first fallback path.
    in2, out2 = 256, 32
    kw2, kb2, kx2 = jax.random.split(kw, 3)
    w2 = jax.random.uniform(kw2, (in2, out2), dtype=jnp.float32,
                            minval=-stdv, maxval=stdv)
    b2 = jax.random.uniform(kb2, (out2,), dtype=jnp.float32,
                            minval=-stdv, maxval=stdv)
    x2 = jax.random.normal(kx2, (num_nodes, in2), dtype=jnp.float32)
    out_b2 = jax.block_until_ready(gcn(x2, adj, w2, b2))
    ref_b2 = adj @ (x2 @ w2) + b2
    assert jnp.allclose(out_b2, ref_b2, atol=1e-3, rtol=1e-3)

    # Bandwidth option: bf16 adjacency / feature streams, f32 accumulation.
    out_bf16 = jax.block_until_ready(gcn(x, adj, weight, bias, use_bf16=True))
    assert jnp.allclose(out_bf16, ref, atol=5e-2, rtol=5e-2)

    print("KERNEL_OK")
</pallas_src>

<mosaic_0001>
module attributes {stable_mosaic.version = 11 : i64} {
  func.func @kernel(%arg0: i32, %arg1: i32, %arg2: memref<8x128xf32, #tpu.memory_space<vmem>>, %arg3: memref<128x128xf32, #tpu.memory_space<vmem>>, %arg4: memref<128x128xf32, #tpu.memory_space<vmem>>, %arg5: memref<1x128xf32, #tpu.memory_space<vmem>>, %arg6: memref<8x128xf32, #tpu.memory_space<vmem>>, %arg7: memref<8x128xf32, #tpu.memory_space<vmem>>) attributes {dimension_semantics = [#tpu.dimension_semantics<parallel>, #tpu.dimension_semantics<arbitrary>], iteration_bounds = array<i64: 1, 1>, scalar_prefetch = 0 : i64, scratch_operands = 1 : i64, tpu.core_type = #tpu.core_type<tc>, window_params = [{transform_indices = @transform_0, window_bounds = array<i64: 8, 128>}, {transform_indices = @transform_1, window_bounds = array<i64: 128, 128>}, {pipeline_mode = #tpu.pipeline_mode<synchronous>, transform_indices = @transform_2, window_bounds = array<i64: 128, 128>}, {pipeline_mode = #tpu.pipeline_mode<synchronous>, transform_indices = @transform_3, window_bounds = array<i64: 1, 128>}, {transform_indices = @transform_4, window_bounds = array<i64: 8, 128>}]} {
    %c0_i32 = arith.constant 0 : i32
    %0 = arith.cmpi eq, %arg1, %c0_i32 : i32
    %1 = arith.extui %0 : i1 to i32
    %c0_i32_0 = arith.constant 0 : i32
    %2 = arith.cmpi ne, %1, %c0_i32_0 : i32
    scf.if %2 {
      %cst_13 = arith.constant 0.000000e+00 : f32
      %27 = vector.broadcast %cst_13 : f32 to vector<8x128xf32>
      %c0_14 = arith.constant 0 : index
      %c0_15 = arith.constant 0 : index
      %28 = vector.load %arg7[%c0_14, %c0_15] : memref<8x128xf32, #tpu.memory_space<vmem>>, vector<8x128xf32>
      tpu.vector_store %arg7[%c0_14, %c0_15], %27 {strides = array<i32>} : memref<8x128xf32, #tpu.memory_space<vmem>>, vector<8x128xf32>,
    } else {
    }
    %c0 = arith.constant 0 : index
    %c0_1 = arith.constant 0 : index
    %3 = vector.load %arg2[%c0, %c0_1] : memref<8x128xf32, #tpu.memory_space<vmem>>, vector<8x128xf32>
    %c0_2 = arith.constant 0 : index
    %c0_3 = arith.constant 0 : index
    %4 = vector.load %arg3[%c0_2, %c0_3] : memref<128x128xf32, #tpu.memory_space<vmem>>, vector<128x128xf32>
    %c128_i32 = arith.constant 128 : i32
    %5 = arith.muli %arg1, %c128_i32 : i32
    %6 = tpu.iota {dimensions = array<i32: 1>} : vector<8x128xi32>
    %7 = vector.broadcast %5 : i32 to vector<8x128xi32>
    %8 = arith.addi %7, %6 : vector<8x128xi32>
    %c8_i32 = arith.constant 8 : i32
    %9 = vector.broadcast %c8_i32 : i32 to vector<8x128xi32>
    %10 = arith.cmpi slt, %8, %9 : vector<8x128xi32>
    %cst = arith.constant 0.000000e+00 : f32
    %11 = vector.broadcast %cst : f32 to vector<8x128xf32>
    %12 = arith.select %10, %3, %11 : vector<8x128xi1>, vector<8x128xf32>
    %13 = tpu.iota {dimensions = array<i32: 0>} : vector<128x128xi32>
    %14 = vector.broadcast %5 : i32 to vector<128x128xi32>
    %15 = arith.addi %14, %13 : vector<128x128xi32>
    %c8_i32_4 = arith.constant 8 : i32
    %16 = vector.broadcast %c8_i32_4 : i32 to vector<128x128xi32>
    %17 = arith.cmpi slt, %15, %16 : vector<128x128xi32>
    %cst_5 = arith.constant 0.000000e+00 : f32
    %18 = vector.broadcast %cst_5 : f32 to vector<128x128xf32>
    %19 = arith.select %17, %4, %18 : vector<128x128xi1>, vector<128x128xf32>
    %c0_6 = arith.constant 0 : index
    %c0_7 = arith.constant 0 : index
    %20 = vector.load %arg7[%c0_6, %c0_7] : memref<8x128xf32, #tpu.memory_space<vmem>>, vector<8x128xf32>
    %cst_8 = arith.constant dense<0.000000e+00> : vector<8x128xf32>
    %21 = tpu.matmul %12, %19, %cst_8 {dimension_numbers = #tpu.dot_dimension_numbers<[1], [0], [0], [1], [0, 0, 1, 1], [], []>} : vector<8x128xf32>, vector<128x128xf32>, vector<8x128xf32> -> vector<8x128xf32>
    %22 = arith.addf %20, %21 : vector<8x128xf32>
    %c0_9 = arith.constant 0 : index
    %c0_10 = arith.constant 0 : index
    %23 = vector.load %arg7[%c0_9, %c0_10] : memref<8x128xf32, #tpu.memory_space<vmem>>, vector<8x128xf32>
    tpu.vector_store %arg7[%c0_9, %c0_10], %22 {strides = array<i32>} : memref<8x128xf32, #tpu.memory_space<vmem>>, vector<8x128xf32>,
    %c0_i32_11 = arith.constant 0 : i32
    %24 = arith.cmpi eq, %arg1, %c0_i32_11 : i32
    %25 = arith.extui %24 : i1 to i32
    %c0_i32_12 = arith.constant 0 : i32
    %26 = arith.cmpi ne, %25, %c0_i32_12 : i32
    scf.if %26 {
      %c0_13 = arith.constant 0 : index
      %c0_14 = arith.constant 0 : index
      %27 = vector.load %arg7[%c0_13, %c0_14] : memref<8x128xf32, #tpu.memory_space<vmem>>, vector<8x128xf32>
      %c0_15 = arith.constant 0 : index
      %c0_16 = arith.constant 0 : index
      %28 = vector.load %arg4[%c0_15, %c0_16] : memref<128x128xf32, #tpu.memory_space<vmem>>, vector<128x128xf32>
      %cst_17 = arith.constant dense<0.000000e+00> : vector<8x128xf32>
      %29 = tpu.matmul %27, %28, %cst_17 {dimension_numbers = #tpu.dot_dimension_numbers<[1], [0], [0], [1], [0, 0, 1, 1], [], []>} : vector<8x128xf32>, vector<128x128xf32>, vector<8x128xf32> -> vector<8x128xf32>
      %c0_18 = arith.constant 0 : index
      %c0_19 = arith.constant 0 : index
      %30 = vector.load %arg5[%c0_18, %c0_19] : memref<1x128xf32, #tpu.memory_space<vmem>>, vector<1x128xf32>
      %31 = vector.broadcast %30 : vector<1x128xf32> to vector<8x128xf32>
      %32 = arith.addf %29, %31 : vector<8x128xf32>
      %c0_20 = arith.constant 0 : index
      %c0_21 = arith.constant 0 : index
      %33 = vector.load %arg6[%c0_20, %c0_21] : memref<8x128xf32, #tpu.memory_space<vmem>>, vector<8x128xf32>
      tpu.vector_store %arg6[%c0_20, %c0_21], %32 {strides = array<i32>} : memref<8x128xf32, #tpu.memory_space<vmem>>, vector<8x128xf32>,
    } else {
    }
    return
  }
  func.func @transform_0(%arg0: i32, %arg1: i32) -> (i32, i32) {
    %c0_i32 = arith.constant 0 : i32
    return %arg0, %arg1 : i32, i32
  }
  func.func @transform_1(%arg0: i32, %arg1: i32) -> (i32, i32) {
    %c0_i32 = arith.constant 0 : i32
    %c0_i32_0 = arith.constant 0 : i32
    return %arg1, %c0_i32 : i32, i32
  }
  func.func @transform_2(%arg0: i32, %arg1: i32) -> (i32, i32) {
    %c0_i32 = arith.constant 0 : i32
    %c0_i32_0 = arith.constant 0 : i32
    %c0_i32_1 = arith.constant 0 : i32
    return %c0_i32, %c0_i32_0 : i32, i32
  }
  func.func @transform_3(%arg0: i32, %arg1: i32) -> (i32, i32) {
    %c0_i32 = arith.constant 0 : i32
    %c0_i32_0 = arith.constant 0 : i32
    %c0_i32_1 = arith.constant 0 : i32
    return %c0_i32, %c0_i32_0 : i32, i32
  }
  func.func @transform_4(%arg0: i32, %arg1: i32) -> (i32, i32) {
    %c0_i32 = arith.constant 0 : i32
    %c0_i32_0 = arith.constant 0 : i32
    return %arg0, %c0_i32 : i32, i32
  }
}

</mosaic_0001>

<llo_original>
// kernel: graph_convolution.1
$region0: #{graph_convolution.1}
  #allocation0 [shape = 'u32[]', space=smem, size = 0x4, offset = 0x4, fixed_abs, tag = 'smem constant byte address 0x4 - core index']
  #allocation1 [shape = 'u32[144,128]{1,0:T(1,128)}', space=vmem, size = 0x12000, scoped, tag = 'internal scratch']
  #allocation2 [shape = 'f32[8,128]{1,0:T(8,128)}', space=vmem, size = 0x1000, scoped, tag = 'scratch operand']
  %s0 = inlined_call_operand.vmem [shape: f32[8,8], index: 0, kind: input, shape index: {}]
  %s1 = inlined_call_operand.vmem [shape: f32[8,128], index: 1, kind: input, shape index: {}]
  %s2 = inlined_call_operand.vmem [shape: f32[128,128], index: 2, kind: input, shape index: {}]
  %s3 = inlined_call_operand.vmem [shape: f32[1,128], index: 3, kind: input, shape index: {}]
  %s4 = inlined_call_operand.hbm [shape: f32[8,128], index: 4, kind: output, shape index: {}]
  %s5 = sld [smem:[#allocation0]]
  $region34: #{graph_convolution.1} parent=0
    _
  %s7 = ssub.s32 1, %s5
  %s8 = scalar_select 0, %s7, %s5
  $region1: #{graph_convolution.1} parent=0
    #allocation3 [shape = 'u8[4096]{0}', space=vmem, size = 0x1000, scoped, tag = 'output window, operand 0, single buffered']
    #allocation4 [shape = 's32[1]{0}', space=sflag, size = 0x4, scoped, tag = 'scoped memory for graph_convolution.1']
    %9 = vsyncpa [#allocation4], 0
    // Predicated region
    $region2: #{graph_convolution.1} parent=1 // pred_check
      _
    $region3: #{graph_convolution.1} parent=1 // pred_check_branch
      %11 = sbr.rel (0) target = $region5
    $region4: #{graph_convolution.1} parent=1 // pred_region
      _
    $region5: #{graph_convolution.1} parent=1 // pred_fallthru
      _
    // Predicated region
    $region6: #{graph_convolution.1} parent=1 // pred_check
      _
    $region7: #{graph_convolution.1} parent=1 // pred_check_branch
      %13 = sbr.rel (0) target = $region9
    $region8: #{graph_convolution.1} parent=1 // pred_region
      _
    $region9: #{graph_convolution.1} parent=1 // pred_fallthru
      _
    // Predicated region
    $region10: #{graph_convolution.1} parent=1 // pred_check
      _
    $region11: #{graph_convolution.1} parent=1 // pred_check_branch
      %15 = sbr.rel (0) target = $region13
    $region12: #{graph_convolution.1} parent=1 // pred_region
      _
    $region13: #{graph_convolution.1} parent=1 // pred_fallthru
      _
    // Predicated region
    $region14: #{graph_convolution.1} parent=1 // pred_check
      _
    $region15: #{graph_convolution.1} parent=1 // pred_check_branch
      %17 = sbr.rel (0) target = $region17
    $region16: #{graph_convolution.1} parent=1 // pred_region
      _
    $region17: #{graph_convolution.1} parent=1 // pred_fallthru
      _
    %p18 = scmp.eq.s32.totalorder 0, 0
    // Predicated region
    $region18: #{graph_convolution.1} parent=1 // pred_check
      %p19 = pneg %p18
    $region19: #{graph_convolution.1} parent=1 // pred_check_branch
      %21 = sbr.rel (%p19) target = $region21
    $region20: #{graph_convolution.1} parent=1 // pred_region
      %22 = vst [vmem:[#allocation2] sm:$0xff] 0.0
    $region21: #{graph_convolution.1} parent=1 // pred_fallthru
      _
    %v23 = vld [vmem:[%s0] sm:$0xff]
    %v24 = vld [vmem:[%s1] sm:$0xff]
    %v25 = vld [vmem:[%s1 + $0x8] sm:$0xff]
    %v26 = vld [vmem:[%s1 + $0x10] sm:$0xff]
    %v27 = vld [vmem:[%s1 + $0x18] sm:$0xff]
    %v28 = vld [vmem:[%s1 + $0x20] sm:$0xff]
    %v29 = vld [vmem:[%s1 + $0x28] sm:$0xff]
    %v30 = vld [vmem:[%s1 + $0x30] sm:$0xff]
    %v31 = vld [vmem:[%s1 + $0x38] sm:$0xff]
    %v32 = vld [vmem:[%s1 + $0x40] sm:$0xff]
    %v33 = vld [vmem:[%s1 + $0x48] sm:$0xff]
    %v34 = vld [vmem:[%s1 + $0x50] sm:$0xff]
    %v35 = vld [vmem:[%s1 + $0x58] sm:$0xff]
    %v36 = vld [vmem:[%s1 + $0x60] sm:$0xff]
    %v37 = vld [vmem:[%s1 + $0x68] sm:$0xff]
    %v38 = vld [vmem:[%s1 + $0x70] sm:$0xff]
    %v39 = vld [vmem:[%s1 + $0x78] sm:$0xff]
    %s40 = smul.u32 0, 128
    %v41 = vlaneseq
    %v42 = vand.u32 %v41, 127
    %v43 = vstv %s40
    %v44 = vadd.s32 %v43, %v42
    %vm45 = vcmp.lt.s32.totalorder %v44, 8
    %v46 = vsel %vm45, %v23, 0.0
    %v47 = vlaneseq
    %v48 = vshrl.u32 %v47, 7
    %v49 = vadd.s32 %v48, 8
    %v50 = vadd.s32 %v48, 16
    %v51 = vadd.s32 %v48, 24
    %v52 = vadd.s32 %v48, 32
    %v53 = vadd.s32 %v48, 40
    %v54 = vadd.s32 %v48, 48
    %v55 = vadd.s32 %v48, 56
    %v56 = vadd.s32 %v48, 64
    %v57 = vadd.s32 %v48, 72
    %v58 = vadd.s32 %v48, 80
    %v59 = vadd.s32 %v48, 88
    %v60 = vadd.s32 %v48, 96
    %v61 = vadd.s32 %v48, 104
    %v62 = vadd.s32 %v48, 112
    %v63 = vadd.s32 %v48, 120
    %v64 = vadd.s32 %v43, %v48
    %v65 = vadd.s32 %v43, %v49
    %v66 = vadd.s32 %v43, %v50
    %v67 = vadd.s32 %v43, %v51
    %v68 = vadd.s32 %v43, %v52
    %v69 = vadd.s32 %v43, %v53
    %v70 = vadd.s32 %v43, %v54
    %v71 = vadd.s32 %v43, %v55
    %v72 = vadd.s32 %v43, %v56
    %v73 = vadd.s32 %v43, %v57
    %v74 = vadd.s32 %v43, %v58
    %v75 = vadd.s32 %v43, %v59
    %v76 = vadd.s32 %v43, %v60
    %v77 = vadd.s32 %v43, %v61
    %v78 = vadd.s32 %v43, %v62
    %v79 = vadd.s32 %v43, %v63
    %vm80 = vcmp.lt.s32.totalorder %v64, 8
    %vm81 = vcmp.lt.s32.totalorder %v65, 8
    %vm82 = vcmp.lt.s32.totalorder %v66, 8
    %vm83 = vcmp.lt.s32.totalorder %v67, 8
    %vm84 = vcmp.lt.s32.totalorder %v68, 8
    %vm85 = vcmp.lt.s32.totalorder %v69, 8
    %vm86 = vcmp.lt.s32.totalorder %v70, 8
    %vm87 = vcmp.lt.s32.totalorder %v71, 8
    %vm88 = vcmp.lt.s32.totalorder %v72, 8
    %vm89 = vcmp.lt.s32.totalorder %v73, 8
    %vm90 = vcmp.lt.s32.totalorder %v74, 8
    %vm91 = vcmp.lt.s32.totalorder %v75, 8
    %vm92 = vcmp.lt.s32.totalorder %v76, 8
    %vm93 = vcmp.lt.s32.totalorder %v77, 8
    %vm94 = vcmp.lt.s32.totalorder %v78, 8
    %vm95 = vcmp.lt.s32.totalorder %v79, 8
    %v96 = vsel %vm80, %v24, 0.0
    %v97 = vsel %vm81, %v25, 0.0
    %v98 = vsel %vm82, %v26, 0.0
    %v99 = vsel %vm83, %v27, 0.0
    %v100 = vsel %vm84, %v28, 0.0
    %v101 = vsel %vm85, %v29, 0.0
    %v102 = vsel %vm86, %v30, 0.0
    %v103 = vsel %vm87, %v31, 0.0
    %v104 = vsel %vm88, %v32, 0.0
    %v105 = vsel %vm89, %v33, 0.0
    %v106 = vsel %vm90, %v34, 0.0
    %v107 = vsel %vm91, %v35, 0.0
    %v108 = vsel %vm92, %v36, 0.0
    %v109 = vsel %vm93, %v37, 0.0
    %v110 = vsel %vm94, %v38, 0.0
    %v111 = vsel %vm95, %v39, 0.0
    %v112 = vld [vmem:[#allocation2] sm:$0xff]
    %113 = vmatprep.subr.mxu0 0.0
    %114 = vmatpush1.msra.mxu0 %v111
    %115 = vmatprep.subr.mxu0 0.0
    %116 = vmatpush1.msra.mxu0 %v110
    %117 = vmatprep.subr.mxu0 0.0
    %118 = vmatpush1.msra.mxu0 %v109
    %119 = vmatprep.subr.mxu0 0.0
    %120 = vmatpush1.msra.mxu0 %v108
    %121 = vmatprep.subr.mxu0 0.0
    %122 = vmatpush1.msra.mxu0 %v107
    %123 = vmatprep.subr.mxu0 0.0
    %124 = vmatpush1.msra.mxu0 %v106
    %125 = vmatprep.subr.mxu0 0.0
    %126 = vmatpush1.msra.mxu0 %v105
    %127 = vmatprep.subr.mxu0 0.0
    %128 = vmatpush1.msra.mxu0 %v104
    %129 = vmatprep.subr.mxu0 0.0
    %130 = vmatpush1.msra.mxu0 %v103
    %131 = vmatprep.subr.mxu0 0.0
    %132 = vmatpush1.msra.mxu0 %v102
    %133 = vmatprep.subr.mxu0 0.0
    %134 = vmatpush1.msra.mxu0 %v101
    %135 = vmatprep.subr.mxu0 0.0
    %136 = vmatpush1.msra.mxu0 %v100
    %137 = vmatprep.subr.mxu0 0.0
    %138 = vmatpush1.msra.mxu0 %v99
    %139 = vmatprep.subr.mxu0 0.0
    %140 = vmatpush1.msra.mxu0 %v98
    %141 = vmatprep.subr.mxu0 0.0
    %142 = vmatpush1.msra.mxu0 %v97
    %143 = vmatprep.subr.mxu0 0.0
    %144 = vmatpush1.msra.mxu0 %v96
    %145 = vmatprep.subr.mxu0 0.0
    %146 = vmatpush2.msra.mxu0 0.0
    %147 = vmatprep.subr.mxu0 0.0
    %148 = vmatpush2.msra.mxu0 0.0
    %149 = vmatprep.subr.mxu0 0.0
    %150 = vmatpush2.msra.mxu0 0.0
    %151 = vmatprep.subr.mxu0 0.0
    %152 = vmatpush2.msra.mxu0 0.0
    %153 = vmatprep.subr.mxu0 0.0
    %154 = vmatpush2.msra.mxu0 0.0
    %155 = vmatprep.subr.mxu0 0.0
    %156 = vmatpush2.msra.mxu0 0.0
    %157 = vmatprep.subr.mxu0 0.0
    %158 = vmatpush2.msra.mxu0 0.0
    %159 = vmatprep.subr.mxu0 0.0
    %160 = vmatpush2.msra.mxu0 0.0
    %161 = vmatprep.subr.mxu0 0.0
    %162 = vmatpush2.msra.mxu0 0.0
    %163 = vmatprep.subr.mxu0 0.0
    %164 = vmatpush2.msra.mxu0 0.0
    %165 = vmatprep.subr.mxu0 0.0
    %166 = vmatpush2.msra.mxu0 0.0
    %167 = vmatprep.subr.mxu0 0.0
    %168 = vmatpush2.msra.mxu0 0.0
    %169 = vmatprep.subr.mxu0 0.0
    %170 = vmatpush2.msra.mxu0 0.0
    %171 = vmatprep.subr.mxu0 0.0
    %172 = vmatpush2.msra.mxu0 0.0
    %173 = vmatprep.subr.mxu0 0.0
    %174 = vmatpush2.msra.mxu0 0.0
    %175 = vmatprep.subr.mxu0 0.0
    %176 = vmatpush2.msra.mxu0 0.0
    %177 = vmatprep.mubr.f32.mxu0 0.0
    %178 = vmatmul.mubr.f32.gmra.mxu0 %v46
    %v179 = vpop.f32.mrf.mxu0
    %v180 = vadd.f32 0.0, %v179
    %v181 = vpop.f32.mrf.mxu0
    %182 = vdwg.mxu0
    %v183 = vadd.f32 %v112, %v180
    %184 = vst [vmem:[#allocation2] sm:$0xff] %v183
    // Predicated region
    $region22: #{graph_convolution.1} parent=1 // pred_check
      %p185 = pneg %p18
    $region23: #{graph_convolution.1} parent=1 // pred_check_branch
      %187 = sbr.rel (%p185) target = $region25
    $region24: #{graph_convolution.1} parent=1 // pred_region
      %v188 = vld [vmem:[#allocation2] sm:$0xff]
      %v189 = vld [vmem:[%s2] sm:$0xff]
      %v190 = vld [vmem:[%s2 + $0x8] sm:$0xff]
      %v191 = vld [vmem:[%s2 + $0x10] sm:$0xff]
      %v192 = vld [vmem:[%s2 + $0x18] sm:$0xff]
      %v193 = vld [vmem:[%s2 + $0x20] sm:$0xff]
      %v194 = vld [vmem:[%s2 + $0x28] sm:$0xff]
      %v195 = vld [vmem:[%s2 + $0x30] sm:$0xff]
      %v196 = vld [vmem:[%s2 + $0x38] sm:$0xff]
      %v197 = vld [vmem:[%s2 + $0x40] sm:$0xff]
      %v198 = vld [vmem:[%s2 + $0x48] sm:$0xff]
      %v199 = vld [vmem:[%s2 + $0x50] sm:$0xff]
      %v200 = vld [vmem:[%s2 + $0x58] sm:$0xff]
      %v201 = vld [vmem:[%s2 + $0x60] sm:$0xff]
      %v202 = vld [vmem:[%s2 + $0x68] sm:$0xff]
      %v203 = vld [vmem:[%s2 + $0x70] sm:$0xff]
      %v204 = vld [vmem:[%s2 + $0x78] sm:$0xff]
      %v205 = vld [vmem:[%s3] sm:$0x1]
      %v207 = vlaneseq
      %v208 = vshrl.u32 %v207, 7
      %v209 = vsub.s32 0, %v208
      %v210 = vrot.slane %v205, %v209
      %212 = vmatprep.subr.mxu0 0.0
      %213 = vmatpush1.msra.mxu0 %v204
      %214 = vmatprep.subr.mxu0 0.0
      %215 = vmatpush1.msra.mxu0 %v203
      %216 = vmatprep.subr.mxu0 0.0
      %217 = vmatpush1.msra.mxu0 %v202
      %218 = vmatprep.subr.mxu0 0.0
      %219 = vmatpush1.msra.mxu0 %v201
      %220 = vmatprep.subr.mxu0 0.0
      %221 = vmatpush1.msra.mxu0 %v200
      %222 = vmatprep.subr.mxu0 0.0
      %223 = vmatpush1.msra.mxu0 %v199
      %224 = vmatprep.subr.mxu0 0.0
      %225 = vmatpush1.msra.mxu0 %v198
      %226 = vmatprep.subr.mxu0 0.0
      %227 = vmatpush1.msra.mxu0 %v197
      %228 = vmatprep.subr.mxu0 0.0
      %229 = vmatpush1.msra.mxu0 %v196
      %230 = vmatprep.subr.mxu0 0.0
      %231 = vmatpush1.msra.mxu0 %v195
      %232 = vmatprep.subr.mxu0 0.0
      %233 = vmatpush1.msra.mxu0 %v194
      %234 = vmatprep.subr.mxu0 0.0
      %235 = vmatpush1.msra.mxu0 %v193
      %236 = vmatprep.subr.mxu0 0.0
      %237 = vmatpush1.msra.mxu0 %v192
      %238 = vmatprep.subr.mxu0 0.0
      %239 = vmatpush1.msra.mxu0 %v191
      %240 = vmatprep.subr.mxu0 0.0
      %241 = vmatpush1.msra.mxu0 %v190
      %242 = vmatprep.subr.mxu0 0.0
      %243 = vmatpush1.msra.mxu0 %v189
      %244 = vmatprep.subr.mxu0 0.0
      %245 = vmatpush2.msra.mxu0 0.0
      %246 = vmatprep.subr.mxu0 0.0
      %247 = vmatpush2.msra.mxu0 0.0
      %248 = vmatprep.subr.mxu0 0.0
      %249 = vmatpush2.msra.mxu0 0.0
      %250 = vmatprep.subr.mxu0 0.0
      %251 = vmatpush2.msra.mxu0 0.0
      %252 = vmatprep.subr.mxu0 0.0
      %253 = vmatpush2.msra.mxu0 0.0
      %254 = vmatprep.subr.mxu0 0.0
      %255 = vmatpush2.msra.mxu0 0.0
      %256 = vmatprep.subr.mxu0 0.0
      %257 = vmatpush2.msra.mxu0 0.0
      %258 = vmatprep.subr.mxu0 0.0
      %259 = vmatpush2.msra.mxu0 0.0
      %260 = vmatprep.subr.mxu0 0.0
      %261 = vmatpush2.msra.mxu0 0.0
      %262 = vmatprep.subr.mxu0 0.0
      %263 = vmatpush2.msra.mxu0 0.0
      %264 = vmatprep.subr.mxu0 0.0
      %265 = vmatpush2.msra.mxu0 0.0
      %266 = vmatprep.subr.mxu0 0.0
      %267 = vmatpush2.msra.mxu0 0.0
      %268 = vmatprep.subr.mxu0 0.0
      %269 = vmatpush2.msra.mxu0 0.0
      %270 = vmatprep.subr.mxu0 0.0
      %271 = vmatpush2.msra.mxu0 0.0
      %272 = vmatprep.subr.mxu0 0.0
      %273 = vmatpush2.msra.mxu0 0.0
      %274 = vmatprep.subr.mxu0 0.0
      %275 = vmatpush2.msra.mxu0 0.0
      %276 = vmatprep.mubr.f32.mxu0 0.0
      %277 = vmatmul.mubr.f32.gmra.mxu0 %v188
      %v278 = vpop.f32.mrf.mxu0
      %v279 = vadd.f32 %v210, %v278
      %v280 = vpop.f32.mrf.mxu0
      %281 = vdwg.mxu0
      %282 = vst [vmem:[#allocation3] sm:$0xff] %v279
    $region25: #{graph_convolution.1} parent=1 // pred_fallthru
      _
    // Predicated region
    $region26: #{graph_convolution.1} parent=1 // pred_check
      _
    $region27: #{graph_convolution.1} parent=1 // pred_check_branch
      %284 = sbr.rel (0) target = $region29
    $region28: #{graph_convolution.1} parent=1 // pred_region
      %s286 = ssub.s32 128, 128
      %287 = vsyncadd [#allocation4], %s286
      %s289 = sshll.u32 [#allocation3], 4
      %s290 = int_to_ptr.vmem [resolvable:$true] %s289
      %292 = dma.vmem_to_hbm [thread:$0]  %s290, 128, %s4, [#allocation4]
    $region29: #{graph_convolution.1} parent=1 // pred_fallthru
      _
    // Predicated region
    $region30: #{graph_convolution.1} parent=1 // pred_check
      _
    $region31: #{graph_convolution.1} parent=1 // pred_check_branch
      %294 = sbr.rel (0) target = $region33
    $region32: #{graph_convolution.1} parent=1 // pred_region
      %295 = dma.done [#allocation4], 128
    $region33: #{graph_convolution.1} parent=1 // pred_fallthru
      _
    %296 = vsyncpa [#allocation4], 1

</llo_original>
